<compile_context>
chip_gen: v7x
topology: tpu7x:2x2x1
jax: 0.10.0
libtpu: 0.0.40
codegen_flags: <defaults>
</compile_context>

<pallas_src>
import math

import jax
import jax.numpy as jnp
from jax.experimental import pallas as pl
from jax.experimental.pallas import tpu as pltpu


# -----------------------------------------------------------------------------
# Kernels
# -----------------------------------------------------------------------------
def _svd_kernel_w1_first(w1_ref, w2_ref, bias_ref, x_ref, o_ref):
    """t[b] = w1 @ x[b] (batched), then y = concat_b(t) @ w2 + bias (folded)."""
    tb = x_ref.shape[0]
    w1 = w1_ref[...]                                  # (oh, ih), native dtype
    xt = x_ref[...]                                   # (tb, ih, iw)
    # Shared w1 streams as the MXU LHS; each unique x[b] tile is the pushed RHS,
    # so no shared weight is ever re-pushed and no transposes are needed.
    parts = [jnp.dot(w1, xt[b], preferred_element_type=jnp.float32)
             for b in range(tb)]                      # tb x (oh, iw), f32 acc
    t = jnp.concatenate(parts, axis=0)                # (tb*oh, iw)
    t = t.astype(w2_ref.dtype)                        # keep both matmuls in input dtype
    y = jnp.dot(t, w2_ref[...],
                preferred_element_type=jnp.float32)   # one 2D MXU op: (tb*oh, ow)
    y = y + jnp.tile(bias_ref[...], (tb, 1))
    o_ref[...] = y.astype(o_ref.dtype)                # dense 2D slab store


def _svd_kernel_w2_first(w1_ref, w2_ref, bias_ref, x_ref, o_ref):
    """z = x2d @ w2 folded over the batch, then y[b] = w1 @ z[b]."""
    oh, ih = w1_ref.shape
    tb = x_ref.shape[0] // ih                         # x_ref is (tb*ih, iw)
    z = jnp.dot(x_ref[...], w2_ref[...],
                preferred_element_type=jnp.float32)   # one 2D MXU op: (tb*ih, ow)
    z = z.astype(w1_ref.dtype)
    w1 = w1_ref[...]
    parts = [jnp.dot(w1, z[b * ih:(b + 1) * ih, :],
                     preferred_element_type=jnp.float32)
             for b in range(tb)]                      # tb x (oh, ow)
    y = jnp.concatenate(parts, axis=0)                # (tb*oh, ow)
    y = y + jnp.tile(bias_ref[...], (tb, 1))
    o_ref[...] = y.astype(o_ref.dtype)


# -----------------------------------------------------------------------------
# Tiling / VMEM sizing
# -----------------------------------------------------------------------------
def _tile_vmem_bytes(tb, ih, iw, oh, ow, itemsize, w1_first, weight_buffers=2):
    x_io = 2 * tb * ih * iw * itemsize                     # double-buffered x tile
    y_io = 2 * tb * oh * ow * itemsize                     # double-buffered y tile
    w = weight_buffers * (oh * ih + iw * ow + oh * ow) * itemsize
    mid = oh * iw if w1_first else ih * ow                 # intermediate per batch elem
    tmp = 4 * tb * (mid + oh * ow)                         # f32 intermediates
    return x_io + y_io + w + tmp


def _choose_batch_tile(B, ih, iw, oh, ow, itemsize, *, w1_first, vmem_budget,
                       multi_core, max_batch_tile=64):
    """Largest divisor of B whose working set fits the budget.  On 2-TC chips
    prefer an even number of grid steps; prefer tiles whose folded-matmul M
    dimension is MXU friendly (>=256, multiple of 128)."""
    m_rows = oh if w1_first else ih
    divisors = [d for d in range(1, B + 1) if B % d == 0 and d <= max_batch_tile]
    fitting = [d for d in divisors
               if _tile_vmem_bytes(d, ih, iw, oh, ow, itemsize, w1_first)
               <= vmem_budget] or [1]
    if multi_core:
        even = [d for d in fitting if (B // d) >= 2 and (B // d) % 2 == 0]
        if even:
            fitting = even
    aligned = [d for d in fitting
               if d * m_rows >= 256 and (d * m_rows) % 128 == 0]
    return max(aligned or fitting)


# -----------------------------------------------------------------------------
# Wrapper
# -----------------------------------------------------------------------------
def svd_layer_forward(x, w1, w2, bias=None, *, batch_tile=None):
    """y[b] = w1 @ x[b] @ w2 (+ bias) for each batch element b."""
    B, ih, iw = x.shape
    oh, ih2 = w1.shape
    iw2, ow = w2.shape
    assert ih == ih2 and iw == iw2, "weight shapes do not match x"
    if bias is None:
        bias = jnp.zeros((oh, ow), x.dtype)

    itemsize = jnp.dtype(x.dtype).itemsize

    # Shape-dependent contraction order (per-batch-element MAC counts).
    flops_w1_first = oh * iw * (ih + ow)   # (w1 @ x) then (. @ w2)
    flops_w2_first = ih * ow * (iw + oh)   # (x @ w2) then (w1 @ .)
    w1_first = flops_w1_first <= flops_w2_first

    # Generation-aware VMEM budget (128 MiB on v5e/v6e, 64 MiB per TC on v7x).
    vmem_capacity = 128 * 1024 * 1024
    try:
        vmem_capacity = int(pltpu.get_tpu_info().vmem_capacity_bytes)
    except Exception:
        pass
    vmem_budget = int(0.75 * vmem_capacity)

    # Only prefer multiple grid steps on multi-TensorCore chips (v7x); on
    # single-core v5e/v6e extra steps are pure per-step pipeline overhead.
    multi_core = False
    try:
        multi_core = int(getattr(jax.devices()[0], "num_cores", 1) or 1) >= 2
    except Exception:
        pass

    tb = batch_tile or _choose_batch_tile(
        B, ih, iw, oh, ow, itemsize, w1_first=w1_first,
        vmem_budget=vmem_budget, multi_core=multi_core)
    assert B % tb == 0, "batch_tile must divide the batch size"
    grid = (B // tb,)

    need = _tile_vmem_bytes(tb, ih, iw, oh, ow, itemsize, w1_first)
    vmem_limit = int(min(max(2 * need, 32 * 1024 * 1024),
                         int(0.85 * vmem_capacity)))   # headroom for Mosaic scratch

    flops_per_b = flops_w1_first if w1_first else flops_w2_first
    cost = pl.CostEstimate(
        flops=2 * B * flops_per_b,
        bytes_accessed=(B * ih * iw + B * oh * ow
                        + oh * ih + iw * ow + oh * ow) * itemsize,
        transcendentals=0,
    )

    if w1_first:
        kernel = _svd_kernel_w1_first
        x_in = x                                            # (B, ih, iw)
        x_blockspec = pl.BlockSpec((tb, ih, iw), lambda b: (b, 0, 0))
    else:
        kernel = _svd_kernel_w2_first
        x_in = x.reshape(B * ih, iw)                        # free metadata reshape
        x_blockspec = pl.BlockSpec((tb * ih, iw), lambda b: (b, 0))
    # TODO(synk): on v7x with long grids, consider pipeline_mode=pl.Buffered(3)
    # for the x BlockSpec to hide DMA issue latency.

    out_blockspec = pl.BlockSpec((tb * oh, ow), lambda b: (b, 0))

    def run(weight_buffers):
        def w_spec(shape):
            if weight_buffers is None:
                return pl.BlockSpec(shape, lambda b: (0,) * len(shape))
            return pl.BlockSpec(shape, lambda b: (0,) * len(shape),
                                pipeline_mode=pl.Buffered(weight_buffers))
        return pl.pallas_call(
            kernel,
            out_shape=jax.ShapeDtypeStruct((B * oh, ow), x.dtype),
            grid_spec=pltpu.PrefetchScalarGridSpec(
                num_scalar_prefetch=0,
                grid=grid,
                in_specs=[
                    w_spec((oh, ih)),      # w1   (resident, constant index_map)
                    w_spec((iw, ow)),      # w2   (resident)
                    w_spec((oh, ow)),      # bias (resident)
                    x_blockspec,           # x batch tile
                ],
                out_specs=out_blockspec,   # lane/sublane-dense 2D output slab
            ),
            compiler_params=pltpu.CompilerParams(
                dimension_semantics=("parallel",),
                vmem_limit_bytes=vmem_limit,
            ),
            cost_estimate=cost,
        )(w1, w2, bias, x_in)

    if grid[0] > 1:
        try:
            # Single-buffer the resident weights/bias (constant index_maps).
            y2d = run(1)
        except Exception:
            # Fallback if this JAX build rejects pipeline_mode / Buffered(1).
            y2d = run(None)
    else:
        y2d = run(None)

    return y2d.reshape(B, oh, ow)


# -----------------------------------------------------------------------------
# Parameter init mirroring SVDLayer.reset_parameters
# -----------------------------------------------------------------------------
def init_params(key, in_size, out_size, dtype=jnp.float32):
    """kaiming_uniform_(a=sqrt(5)) for w1/w2 and the module's bias bound
    1/sqrt((fan_in(w1)+fan_in(w2))/2) = 1/sqrt((ih+ow)/2)."""
    ih, iw = in_size
    oh, ow = out_size
    k1, k2, k3 = jax.random.split(key, 3)
    b1 = 1.0 / math.sqrt(ih)   # fan_in of w1 (oh, ih)
    b2 = 1.0 / math.sqrt(ow)   # fan_in of w2 (iw, ow) is its trailing dim
    w1 = jax.random.uniform(k1, (oh, ih), dtype, minval=-b1, maxval=b1)
    w2 = jax.random.uniform(k2, (iw, ow), dtype, minval=-b2, maxval=b2)
    bound = 1.0 / math.sqrt((ih + ow) / 2.0)
    bias = jax.random.uniform(k3, (oh, ow), dtype, minval=-bound, maxval=bound)
    return w1, w2, bias


def _reference(x, w1, w2, bias):
    y = jnp.einsum("oi,biw->bow", w1, x)
    y = jnp.einsum("bow,wn->bon", y, w2)
    return y + bias


if __name__ == "__main__":
    key = jax.random.PRNGKey(0)
    k1, k2, k3, k4 = jax.random.split(key, 4)

    # Case 1: shapes where the "w1-first" order is cheaper; ow = 128 keeps the
    # folded output stores lane-dense.  Auto tile selection (grid=(1,) here).
    B, in_size, out_size = 8, (16, 32), (8, 128)
    x = jax.random.normal(k1, (B,) + in_size, dtype=jnp.float32)
    w1, w2, bias = init_params(k2, in_size, out_size)
    y = jax.block_until_ready(svd_layer_forward(x, w1, w2, bias))
    ref = _reference(x, w1, w2, bias)
    assert y.shape == (B,) + out_size
    assert jnp.allclose(y, ref, atol=1e-4, rtol=1e-4), \
        float(jnp.max(jnp.abs(y - ref)))

    # Case 2: shapes where the "w2-first" order wins (exercises the other path).
    B2, in_size2, out_size2 = 4, (8, 128), (16, 32)
    x2 = jax.random.normal(k3, (B2,) + in_size2, dtype=jnp.float32)
    w1b, w2b, bias2 = init_params(k4, in_size2, out_size2)
    y2 = jax.block_until_ready(svd_layer_forward(x2, w1b, w2b, bias2))
    ref2 = _reference(x2, w1b, w2b, bias2)
    assert y2.shape == (B2,) + out_size2
    assert jnp.allclose(y2, ref2, atol=1e-4, rtol=1e-4), \
        float(jnp.max(jnp.abs(y2 - ref2)))

    # Case 3: forced multi-step grid (batch_tile=2 -> grid=(4,)) to exercise the
    # pipelined path with single-buffered resident weights.
    y3 = jax.block_until_ready(svd_layer_forward(x, w1, w2, bias, batch_tile=2))
    assert jnp.allclose(y3, ref, atol=1e-4, rtol=1e-4), \
        float(jnp.max(jnp.abs(y3 - ref)))

    print("KERNEL_OK")
</pallas_src>

<mosaic_0001>
module attributes {stable_mosaic.version = 11 : i64} {
  func.func @_svd_kernel_w1_first(%arg0: i32, %arg1: memref<8x16xf32, #tpu.memory_space<vmem>>, %arg2: memref<32x128xf32, #tpu.memory_space<vmem>>, %arg3: memref<8x128xf32, #tpu.memory_space<vmem>>, %arg4: memref<8x16x32xf32, #tpu.memory_space<vmem>>, %arg5: memref<64x128xf32, #tpu.memory_space<vmem>>) attributes {dimension_semantics = [#tpu.dimension_semantics<parallel>], iteration_bounds = array<i64: 1>, scalar_prefetch = 0 : i64, scratch_operands = 0 : i64, tpu.core_type = #tpu.core_type<tc>, window_params = [{pipeline_mode = #tpu.pipeline_mode<synchronous>, transform_indices = @transform_0, window_bounds = array<i64: 8, 16>}, {pipeline_mode = #tpu.pipeline_mode<synchronous>, transform_indices = @transform_1, window_bounds = array<i64: 32, 128>}, {pipeline_mode = #tpu.pipeline_mode<synchronous>, transform_indices = @transform_2, window_bounds = array<i64: 8, 128>}, {transform_indices = @transform_3, window_bounds = array<i64: 8, 16, 32>}, {transform_indices = @transform_4, window_bounds = array<i64: 64, 128>}]} {
    %c0 = arith.constant 0 : index
    %c0_0 = arith.constant 0 : index
    %0 = vector.load %arg1[%c0, %c0_0] : memref<8x16xf32, #tpu.memory_space<vmem>>, vector<8x16xf32>
    %c0_1 = arith.constant 0 : index
    %c0_2 = arith.constant 0 : index
    %c0_3 = arith.constant 0 : index
    %1 = vector.load %arg4[%c0_1, %c0_2, %c0_3] : memref<8x16x32xf32, #tpu.memory_space<vmem>>, vector<8x16x32xf32>
    %2 = vector.extract_strided_slice %1 {offsets = [0, 0, 0], sizes = [1, 16, 32], strides = [1, 1, 1]} : vector<8x16x32xf32> to vector<1x16x32xf32>
    %3 = vector.shape_cast %2 : vector<1x16x32xf32> to vector<16x32xf32>
    %cst = arith.constant dense<0.000000e+00> : vector<8x32xf32>
    %4 = tpu.matmul %0, %3, %cst {dimension_numbers = #tpu.dot_dimension_numbers<[1], [0], [0], [1], [0, 0, 1, 1], [], []>} : vector<8x16xf32>, vector<16x32xf32>, vector<8x32xf32> -> vector<8x32xf32>
    %5 = vector.extract_strided_slice %1 {offsets = [1, 0, 0], sizes = [1, 16, 32], strides = [1, 1, 1]} : vector<8x16x32xf32> to vector<1x16x32xf32>
    %6 = vector.shape_cast %5 : vector<1x16x32xf32> to vector<16x32xf32>
    %cst_4 = arith.constant dense<0.000000e+00> : vector<8x32xf32>
    %7 = tpu.matmul %0, %6, %cst_4 {dimension_numbers = #tpu.dot_dimension_numbers<[1], [0], [0], [1], [0, 0, 1, 1], [], []>} : vector<8x16xf32>, vector<16x32xf32>, vector<8x32xf32> -> vector<8x32xf32>
    %8 = vector.extract_strided_slice %1 {offsets = [2, 0, 0], sizes = [1, 16, 32], strides = [1, 1, 1]} : vector<8x16x32xf32> to vector<1x16x32xf32>
    %9 = vector.shape_cast %8 : vector<1x16x32xf32> to vector<16x32xf32>
    %cst_5 = arith.constant dense<0.000000e+00> : vector<8x32xf32>
    %10 = tpu.matmul %0, %9, %cst_5 {dimension_numbers = #tpu.dot_dimension_numbers<[1], [0], [0], [1], [0, 0, 1, 1], [], []>} : vector<8x16xf32>, vector<16x32xf32>, vector<8x32xf32> -> vector<8x32xf32>
    %11 = vector.extract_strided_slice %1 {offsets = [3, 0, 0], sizes = [1, 16, 32], strides = [1, 1, 1]} : vector<8x16x32xf32> to vector<1x16x32xf32>
    %12 = vector.shape_cast %11 : vector<1x16x32xf32> to vector<16x32xf32>
    %cst_6 = arith.constant dense<0.000000e+00> : vector<8x32xf32>
    %13 = tpu.matmul %0, %12, %cst_6 {dimension_numbers = #tpu.dot_dimension_numbers<[1], [0], [0], [1], [0, 0, 1, 1], [], []>} : vector<8x16xf32>, vector<16x32xf32>, vector<8x32xf32> -> vector<8x32xf32>
    %14 = vector.extract_strided_slice %1 {offsets = [4, 0, 0], sizes = [1, 16, 32], strides = [1, 1, 1]} : vector<8x16x32xf32> to vector<1x16x32xf32>
    %15 = vector.shape_cast %14 : vector<1x16x32xf32> to vector<16x32xf32>
    %cst_7 = arith.constant dense<0.000000e+00> : vector<8x32xf32>
    %16 = tpu.matmul %0, %15, %cst_7 {dimension_numbers = #tpu.dot_dimension_numbers<[1], [0], [0], [1], [0, 0, 1, 1], [], []>} : vector<8x16xf32>, vector<16x32xf32>, vector<8x32xf32> -> vector<8x32xf32>
    %17 = vector.extract_strided_slice %1 {offsets = [5, 0, 0], sizes = [1, 16, 32], strides = [1, 1, 1]} : vector<8x16x32xf32> to vector<1x16x32xf32>
    %18 = vector.shape_cast %17 : vector<1x16x32xf32> to vector<16x32xf32>
    %cst_8 = arith.constant dense<0.000000e+00> : vector<8x32xf32>
    %19 = tpu.matmul %0, %18, %cst_8 {dimension_numbers = #tpu.dot_dimension_numbers<[1], [0], [0], [1], [0, 0, 1, 1], [], []>} : vector<8x16xf32>, vector<16x32xf32>, vector<8x32xf32> -> vector<8x32xf32>
    %20 = vector.extract_strided_slice %1 {offsets = [6, 0, 0], sizes = [1, 16, 32], strides = [1, 1, 1]} : vector<8x16x32xf32> to vector<1x16x32xf32>
    %21 = vector.shape_cast %20 : vector<1x16x32xf32> to vector<16x32xf32>
    %cst_9 = arith.constant dense<0.000000e+00> : vector<8x32xf32>
    %22 = tpu.matmul %0, %21, %cst_9 {dimension_numbers = #tpu.dot_dimension_numbers<[1], [0], [0], [1], [0, 0, 1, 1], [], []>} : vector<8x16xf32>, vector<16x32xf32>, vector<8x32xf32> -> vector<8x32xf32>
    %23 = vector.extract_strided_slice %1 {offsets = [7, 0, 0], sizes = [1, 16, 32], strides = [1, 1, 1]} : vector<8x16x32xf32> to vector<1x16x32xf32>
    %24 = vector.shape_cast %23 : vector<1x16x32xf32> to vector<16x32xf32>
    %cst_10 = arith.constant dense<0.000000e+00> : vector<8x32xf32>
    %25 = tpu.matmul %0, %24, %cst_10 {dimension_numbers = #tpu.dot_dimension_numbers<[1], [0], [0], [1], [0, 0, 1, 1], [], []>} : vector<8x16xf32>, vector<16x32xf32>, vector<8x32xf32> -> vector<8x32xf32>
    %26 = tpu.concatenate %4, %7, %10, %13, %16, %19, %22, %25 in 0 : vector<8x32xf32>, vector<8x32xf32>, vector<8x32xf32>, vector<8x32xf32>, vector<8x32xf32>, vector<8x32xf32>, vector<8x32xf32>, vector<8x32xf32> -> vector<64x32xf32>
    %c0_11 = arith.constant 0 : index
    %c0_12 = arith.constant 0 : index
    %27 = vector.load %arg2[%c0_11, %c0_12] : memref<32x128xf32, #tpu.memory_space<vmem>>, vector<32x128xf32>
    %cst_13 = arith.constant dense<0.000000e+00> : vector<64x128xf32>
    %28 = tpu.matmul %26, %27, %cst_13 {dimension_numbers = #tpu.dot_dimension_numbers<[1], [0], [0], [1], [0, 0, 1, 1], [], []>} : vector<64x32xf32>, vector<32x128xf32>, vector<64x128xf32> -> vector<64x128xf32>
    %c0_14 = arith.constant 0 : index
    %c0_15 = arith.constant 0 : index
    %29 = vector.load %arg3[%c0_14, %c0_15] : memref<8x128xf32, #tpu.memory_space<vmem>>, vector<8x128xf32>
    %30 = tpu.concatenate %29, %29, %29, %29, %29, %29, %29, %29 in 0 : vector<8x128xf32>, vector<8x128xf32>, vector<8x128xf32>, vector<8x128xf32>, vector<8x128xf32>, vector<8x128xf32>, vector<8x128xf32>, vector<8x128xf32> -> vector<64x128xf32>
    %31 = arith.addf %28, %30 : vector<64x128xf32>
    %c0_16 = arith.constant 0 : index
    %c0_17 = arith.constant 0 : index
    %32 = vector.load %arg5[%c0_16, %c0_17] : memref<64x128xf32, #tpu.memory_space<vmem>>, vector<64x128xf32>
    tpu.vector_store %arg5[%c0_16, %c0_17], %31 {strides = array<i32>} : memref<64x128xf32, #tpu.memory_space<vmem>>, vector<64x128xf32>,
    return
  }
  func.func @transform_0(%arg0: i32) -> (i32, i32) {
    %c0_i32 = arith.constant 0 : i32
    %c0_i32_0 = arith.constant 0 : i32
    %c0_i32_1 = arith.constant 0 : i32
    return %c0_i32, %c0_i32_0 : i32, i32
  }
  func.func @transform_1(%arg0: i32) -> (i32, i32) {
    %c0_i32 = arith.constant 0 : i32
    %c0_i32_0 = arith.constant 0 : i32
    %c0_i32_1 = arith.constant 0 : i32
    return %c0_i32, %c0_i32_0 : i32, i32
  }
  func.func @transform_2(%arg0: i32) -> (i32, i32) {
    %c0_i32 = arith.constant 0 : i32
    %c0_i32_0 = arith.constant 0 : i32
    %c0_i32_1 = arith.constant 0 : i32
    return %c0_i32, %c0_i32_0 : i32, i32
  }
  func.func @transform_3(%arg0: i32) -> (i32, i32, i32) {
    %c0_i32 = arith.constant 0 : i32
    %c0_i32_0 = arith.constant 0 : i32
    %c0_i32_1 = arith.constant 0 : i32
    return %arg0, %c0_i32, %c0_i32_0 : i32, i32, i32
  }
  func.func @transform_4(%arg0: i32) -> (i32, i32) {
    %c0_i32 = arith.constant 0 : i32
    %c0_i32_0 = arith.constant 0 : i32
    return %arg0, %c0_i32 : i32, i32
  }
}

</mosaic_0001>

<llo_original>
// kernel: tpu_custom_call.1
$region0: #{tpu_custom_call.1}
  #allocation0 [shape = 'u32[]', space=smem, size = 0x4, offset = 0x4, fixed_abs, tag = 'smem constant byte address 0x4 - core index']
  #allocation1 [shape = 'u32[144,128]{1,0:T(1,128)}', space=vmem, size = 0x12000, scoped, tag = 'internal scratch']
  %s0 = inlined_call_operand.hbm [shape: f32[8,16], index: 0, kind: input, shape index: {}]
  %s1 = inlined_call_operand.hbm [shape: f32[32,128], index: 1, kind: input, shape index: {}]
  %s2 = inlined_call_operand.hbm [shape: f32[8,128], index: 2, kind: input, shape index: {}]
  %s3 = inlined_call_operand.hbm [shape: f32[8,16,32], index: 3, kind: input, shape index: {}]
  %s4 = inlined_call_operand.hbm [shape: f32[64,128], index: 4, kind: output, shape index: {}]
  %s5 = sld [smem:[#allocation0]]
  $region42: #{tpu_custom_call.1} parent=0
    _
  %s7 = ssub.s32 1, %s5
  %s8 = scalar_select 0, %s7, %s5
  $region1: #{tpu_custom_call.1} parent=0
    #allocation2 [shape = 'u8[4096]{0}', space=vmem, size = 0x1000, scoped, tag = 'input window, operand 0, single buffered']
    #allocation3 [shape = 's32[1]{0}', space=sflag, size = 0x4, scoped, tag = 'scoped memory for tpu_custom_call.1']
    #allocation4 [shape = 's32[1]{0}', space=sflag, size = 0x4, scoped, tag = 'scoped memory for tpu_custom_call.1']
    #allocation5 [shape = 'u8[16384]{0}', space=vmem, size = 0x4000, scoped, tag = 'input window, operand 1, single buffered']
    #allocation6 [shape = 's32[1]{0}', space=sflag, size = 0x4, scoped, tag = 'scoped memory for tpu_custom_call.1']
    #allocation7 [shape = 'u8[4096]{0}', space=vmem, size = 0x1000, scoped, tag = 'input window, operand 2, single buffered']
    #allocation8 [shape = 'u8[65536]{0}', space=vmem, size = 0x10000, scoped, tag = 'input window, operand 3, single buffered']
    #allocation9 [shape = 's32[1]{0}', space=sflag, size = 0x4, scoped, tag = 'scoped memory for tpu_custom_call.1']
    #allocation10 [shape = 'u8[32768]{0}', space=vmem, size = 0x8000, scoped, tag = 'output window, operand 0, single buffered']
    %9 = vsyncpa [#allocation3], 0
    %10 = vsyncpa [#allocation6], 0
    %11 = vsyncpa [#allocation9], 0
    %12 = vsyncpa [#allocation4], 0
    // Predicated region
    $region2: #{tpu_custom_call.1} parent=1 // pred_check
      _
    $region3: #{tpu_custom_call.1} parent=1 // pred_check_branch
      %14 = sbr.rel (0) target = $region5
    $region4: #{tpu_custom_call.1} parent=1 // pred_region
      %s16 = ssub.s32 128, 128
      %17 = vsyncadd [#allocation3], %s16
      %s19 = sshll.u32 [#allocation2], 4
      %s20 = int_to_ptr.vmem [resolvable:$true] %s19
      %22 = dma.hbm_to_vmem [thread:$0]  %s0, 128, %s20, [#allocation3]
    $region5: #{tpu_custom_call.1} parent=1 // pred_fallthru
      _
    // Predicated region
    $region6: #{tpu_custom_call.1} parent=1 // pred_check
      _
    $region7: #{tpu_custom_call.1} parent=1 // pred_check_branch
      %24 = sbr.rel (0) target = $region9
    $region8: #{tpu_custom_call.1} parent=1 // pred_region
      %s26 = ssub.s32 512, 512
      %27 = vsyncadd [#allocation6], %s26
      %s28 = sshll.u32 [#allocation5], 4
      %s29 = int_to_ptr.vmem [resolvable:$true] %s28
      %34 = dma.hbm_to_vmem [thread:$0]  %s1, 512, %s29, [#allocation6], 128, 128, 8
    $region9: #{tpu_custom_call.1} parent=1 // pred_fallthru
      _
    // Predicated region
    $region10: #{tpu_custom_call.1} parent=1 // pred_check
      _
    $region11: #{tpu_custom_call.1} parent=1 // pred_check_branch
      %36 = sbr.rel (0) target = $region13
    $region12: #{tpu_custom_call.1} parent=1 // pred_region
      %s38 = ssub.s32 128, 128
      %39 = vsyncadd [#allocation6], %s38
      %s41 = sshll.u32 [#allocation7], 4
      %s42 = int_to_ptr.vmem [resolvable:$true] %s41
      %44 = dma.hbm_to_vmem [thread:$0]  %s2, 128, %s42, [#allocation6]
    $region13: #{tpu_custom_call.1} parent=1 // pred_fallthru
      _
    // Predicated region
    $region14: #{tpu_custom_call.1} parent=1 // pred_check
      _
    $region15: #{tpu_custom_call.1} parent=1 // pred_check_branch
      %46 = sbr.rel (0) target = $region17
    $region16: #{tpu_custom_call.1} parent=1 // pred_region
      %s48 = ssub.s32 2048, 2048
      %49 = vsyncadd [#allocation9], %s48
      %s50 = sshll.u32 [#allocation8], 4
      %s51 = int_to_ptr.vmem [resolvable:$true] %s50
      %56 = dma.hbm_to_vmem [thread:$0]  %s3, 2048, %s51, [#allocation9], 128, 128, 8
    $region17: #{tpu_custom_call.1} parent=1 // pred_fallthru
      _
    // Predicated region
    $region18: #{tpu_custom_call.1} parent=1 // pred_check
      _
    $region19: #{tpu_custom_call.1} parent=1 // pred_check_branch
      %58 = sbr.rel (0) target = $region21
    $region20: #{tpu_custom_call.1} parent=1 // pred_region
      %59 = dma.done [#allocation3], 128
    $region21: #{tpu_custom_call.1} parent=1 // pred_fallthru
      _
    // Predicated region
    $region22: #{tpu_custom_call.1} parent=1 // pred_check
      _
    $region23: #{tpu_custom_call.1} parent=1 // pred_check_branch
      %61 = sbr.rel (0) target = $region25
    $region24: #{tpu_custom_call.1} parent=1 // pred_region
      %62 = dma.done [#allocation6], 512
    $region25: #{tpu_custom_call.1} parent=1 // pred_fallthru
      _
    // Predicated region
    $region26: #{tpu_custom_call.1} parent=1 // pred_check
      _
    $region27: #{tpu_custom_call.1} parent=1 // pred_check_branch
      %64 = sbr.rel (0) target = $region29
    $region28: #{tpu_custom_call.1} parent=1 // pred_region
      %65 = dma.done [#allocation6], 128
    $region29: #{tpu_custom_call.1} parent=1 // pred_fallthru
      _
    // Predicated region
    $region30: #{tpu_custom_call.1} parent=1 // pred_check
      _
    $region31: #{tpu_custom_call.1} parent=1 // pred_check_branch
      %67 = sbr.rel (0) target = $region33
    $region32: #{tpu_custom_call.1} parent=1 // pred_region
      %68 = dma.done [#allocation9], 2048
    $region33: #{tpu_custom_call.1} parent=1 // pred_fallthru
      _
    %v69 = vld [vmem:[#allocation2] sm:$0xff]
    %v70 = vld [vmem:[#allocation8] sm:$0xff]
    %v71 = vld [vmem:[#allocation8 + $0x8] sm:$0xff]
    %v72 = vld [vmem:[#allocation8 + $0x10] sm:$0xff]
    %v73 = vld [vmem:[#allocation8 + $0x18] sm:$0xff]
    %v74 = vld [vmem:[#allocation8 + $0x20] sm:$0xff]
    %v75 = vld [vmem:[#allocation8 + $0x28] sm:$0xff]
    %v76 = vld [vmem:[#allocation8 + $0x30] sm:$0xff]
    %v77 = vld [vmem:[#allocation8 + $0x38] sm:$0xff]
    %v78 = vld [vmem:[#allocation8 + $0x40] sm:$0xff]
    %v79 = vld [vmem:[#allocation8 + $0x48] sm:$0xff]
    %v80 = vld [vmem:[#allocation8 + $0x50] sm:$0xff]
    %v81 = vld [vmem:[#allocation8 + $0x58] sm:$0xff]
    %v82 = vld [vmem:[#allocation8 + $0x60] sm:$0xff]
    %v83 = vld [vmem:[#allocation8 + $0x68] sm:$0xff]
    %v84 = vld [vmem:[#allocation8 + $0x70] sm:$0xff]
    %v85 = vld [vmem:[#allocation8 + $0x78] sm:$0xff]
    %vm86 = vcmask 130048
    %v88 = vsel %vm86, %v69, 0
    %90 = vmatprep.subr.mxu0 0.0
    %91 = vmatpush1.msra.mxu0 %v70
    %92 = vmatprep.subr.mxu0 0.0
    %93 = vmatpush1.msra.mxu0 %v71
    %94 = vmatprep.subr.mxu0 0.0
    %95 = vmatpush1.msra.mxu0 0.0
    %96 = vmatprep.subr.mxu0 0.0
    %97 = vmatpush1.msra.mxu0 0.0
    %98 = vmatprep.subr.mxu0 0.0
    %99 = vmatpush1.msra.mxu0 0.0
    %100 = vmatprep.subr.mxu0 0.0
    %101 = vmatpush1.msra.mxu0 0.0
    %102 = vmatprep.subr.mxu0 0.0
    %103 = vmatpush1.msra.mxu0 0.0
    %104 = vmatprep.subr.mxu0 0.0
    %105 = vmatpush1.msra.mxu0 0.0
    %106 = vmatprep.subr.mxu0 0.0
    %107 = vmatpush1.msra.mxu0 0.0
    %108 = vmatprep.subr.mxu0 0.0
    %109 = vmatpush1.msra.mxu0 0.0
    %110 = vmatprep.subr.mxu0 0.0
    %111 = vmatpush1.msra.mxu0 0.0
    %112 = vmatprep.subr.mxu0 0.0
    %113 = vmatpush1.msra.mxu0 0.0
    %114 = vmatprep.subr.mxu0 0.0
    %115 = vmatpush1.msra.mxu0 0.0
    %116 = vmatprep.subr.mxu0 0.0
    %117 = vmatpush1.msra.mxu0 0.0
    %118 = vmatprep.subr.mxu0 0.0
    %119 = vmatpush1.msra.mxu0 0.0
    %120 = vmatprep.subr.mxu0 0.0
    %121 = vmatpush1.msra.mxu0 0.0
    %122 = vmatprep.subr.mxu0 0.0
    %123 = vmatpush1.msra.mxu0 0.0
    %124 = vmatprep.subr.mxu0 0.0
    %125 = vmatpush1.msra.mxu0 0.0
    %126 = vmatprep.subr.mxu0 0.0
    %127 = vmatpush1.msra.mxu0 0.0
    %128 = vmatprep.subr.mxu0 0.0
    %129 = vmatpush1.msra.mxu0 0.0
    %130 = vmatprep.subr.mxu0 0.0
    %131 = vmatpush1.msra.mxu0 0.0
    %132 = vmatprep.subr.mxu0 0.0
    %133 = vmatpush1.msra.mxu0 0.0
    %134 = vmatprep.subr.mxu0 0.0
    %135 = vmatpush1.msra.mxu0 0.0
    %136 = vmatprep.subr.mxu0 0.0
    %137 = vmatpush1.msra.mxu0 0.0
    %138 = vmatprep.subr.mxu0 0.0
    %139 = vmatpush1.msra.mxu0 0.0
    %140 = vmatprep.subr.mxu0 0.0
    %141 = vmatpush1.msra.mxu0 0.0
    %142 = vmatprep.subr.mxu0 0.0
    %143 = vmatpush1.msra.mxu0 0.0
    %144 = vmatprep.subr.mxu0 0.0
    %145 = vmatpush1.msra.mxu0 0.0
    %146 = vmatprep.subr.mxu0 0.0
    %147 = vmatpush1.msra.mxu0 0.0
    %148 = vmatprep.subr.mxu0 0.0
    %149 = vmatpush1.msra.mxu0 0.0
    %150 = vmatprep.subr.mxu0 0.0
    %151 = vmatpush1.msra.mxu0 0.0
    %152 = vmatprep.subr.mxu0 0.0
    %153 = vmatpush1.msra.mxu0 0.0
    %154 = vmatprep.mubr.f32.mxu0 0.0
    %155 = vmatmul.mubr.f32.gmra.mrb[0].mxu0 %v88
    %v156 = vpop.f32.mrb[0].mxu0
    %v157 = vadd.f32 0.0, %v156
    %v158 = vpop.f32.mrb[0].mxu0
    %159 = vdwg.mxu0
    %160 = vmatprep.subr.mxu0 0.0
    %161 = vmatpush1.msra.mxu0 %v72
    %162 = vmatprep.subr.mxu0 0.0
    %163 = vmatpush1.msra.mxu0 %v73
    %164 = vmatprep.subr.mxu0 0.0
    %165 = vmatpush1.msra.mxu0 0.0
    %166 = vmatprep.subr.mxu0 0.0
    %167 = vmatpush1.msra.mxu0 0.0
    %168 = vmatprep.subr.mxu0 0.0
    %169 = vmatpush1.msra.mxu0 0.0
    %170 = vmatprep.subr.mxu0 0.0
    %171 = vmatpush1.msra.mxu0 0.0
    %172 = vmatprep.subr.mxu0 0.0
    %173 = vmatpush1.msra.mxu0 0.0
    %174 = vmatprep.subr.mxu0 0.0
    %175 = vmatpush1.msra.mxu0 0.0
    %176 = vmatprep.subr.mxu0 0.0
    %177 = vmatpush1.msra.mxu0 0.0
    %178 = vmatprep.subr.mxu0 0.0
    %179 = vmatpush1.msra.mxu0 0.0
    %180 = vmatprep.subr.mxu0 0.0
    %181 = vmatpush1.msra.mxu0 0.0
    %182 = vmatprep.subr.mxu0 0.0
    %183 = vmatpush1.msra.mxu0 0.0
    %184 = vmatprep.subr.mxu0 0.0
    %185 = vmatpush1.msra.mxu0 0.0
    %186 = vmatprep.subr.mxu0 0.0
    %187 = vmatpush1.msra.mxu0 0.0
    %188 = vmatprep.subr.mxu0 0.0
    %189 = vmatpush1.msra.mxu0 0.0
    %190 = vmatprep.subr.mxu0 0.0
    %191 = vmatpush1.msra.mxu0 0.0
    %192 = vmatprep.subr.mxu0 0.0
    %193 = vmatpush1.msra.mxu0 0.0
    %194 = vmatprep.subr.mxu0 0.0
    %195 = vmatpush1.msra.mxu0 0.0
    %196 = vmatprep.subr.mxu0 0.0
    %197 = vmatpush1.msra.mxu0 0.0
    %198 = vmatprep.subr.mxu0 0.0
    %199 = vmatpush1.msra.mxu0 0.0
    %200 = vmatprep.subr.mxu0 0.0
    %201 = vmatpush1.msra.mxu0 0.0
    %202 = vmatprep.subr.mxu0 0.0
    %203 = vmatpush1.msra.mxu0 0.0
    %204 = vmatprep.subr.mxu0 0.0
    %205 = vmatpush1.msra.mxu0 0.0
    %206 = vmatprep.subr.mxu0 0.0
    %207 = vmatpush1.msra.mxu0 0.0
    %208 = vmatprep.subr.mxu0 0.0
    %209 = vmatpush1.msra.mxu0 0.0
    %210 = vmatprep.subr.mxu0 0.0
    %211 = vmatpush1.msra.mxu0 0.0
    %212 = vmatprep.subr.mxu0 0.0
    %213 = vmatpush1.msra.mxu0 0.0
    %214 = vmatprep.subr.mxu0 0.0
    %215 = vmatpush1.msra.mxu0 0.0
    %216 = vmatprep.subr.mxu0 0.0
    %217 = vmatpush1.msra.mxu0 0.0
    %218 = vmatprep.subr.mxu0 0.0
    %219 = vmatpush1.msra.mxu0 0.0
    %220 = vmatprep.subr.mxu0 0.0
    %221 = vmatpush1.msra.mxu0 0.0
    %222 = vmatprep.subr.mxu0 0.0
    %223 = vmatpush1.msra.mxu0 0.0
    %224 = vmatprep.mubr.f32.mxu0 0.0
    %225 = vmatmul.mubr.f32.gmra.mrb[0].mxu0 %v88
    %v226 = vpop.f32.mrb[0].mxu0
    %v227 = vadd.f32 0.0, %v226
    %v228 = vpop.f32.mrb[0].mxu0
    %229 = vdwg.mxu0
    %230 = vmatprep.subr.mxu0 0.0
    %231 = vmatpush1.msra.mxu0 %v74
    %232 = vmatprep.subr.mxu0 0.0
    %233 = vmatpush1.msra.mxu0 %v75
    %234 = vmatprep.subr.mxu0 0.0
    %235 = vmatpush1.msra.mxu0 0.0
    %236 = vmatprep.subr.mxu0 0.0
    %237 = vmatpush1.msra.mxu0 0.0
    %238 = vmatprep.subr.mxu0 0.0
    %239 = vmatpush1.msra.mxu0 0.0
    %240 = vmatprep.subr.mxu0 0.0
    %241 = vmatpush1.msra.mxu0 0.0
    %242 = vmatprep.subr.mxu0 0.0
    %243 = vmatpush1.msra.mxu0 0.0
    %244 = vmatprep.subr.mxu0 0.0
    %245 = vmatpush1.msra.mxu0 0.0
    %246 = vmatprep.subr.mxu0 0.0
    %247 = vmatpush1.msra.mxu0 0.0
    %248 = vmatprep.subr.mxu0 0.0
    %249 = vmatpush1.msra.mxu0 0.0
    %250 = vmatprep.subr.mxu0 0.0
    %251 = vmatpush1.msra.mxu0 0.0
    %252 = vmatprep.subr.mxu0 0.0
    %253 = vmatpush1.msra.mxu0 0.0
    %254 = vmatprep.subr.mxu0 0.0
    %255 = vmatpush1.msra.mxu0 0.0
    %256 = vmatprep.subr.mxu0 0.0
    %257 = vmatpush1.msra.mxu0 0.0
    %258 = vmatprep.subr.mxu0 0.0
    %259 = vmatpush1.msra.mxu0 0.0
    %260 = vmatprep.subr.mxu0 0.0
    %261 = vmatpush1.msra.mxu0 0.0
    %262 = vmatprep.subr.mxu0 0.0
    %263 = vmatpush1.msra.mxu0 0.0
    %264 = vmatprep.subr.mxu0 0.0
    %265 = vmatpush1.msra.mxu0 0.0
    %266 = vmatprep.subr.mxu0 0.0
    %267 = vmatpush1.msra.mxu0 0.0
    %268 = vmatprep.subr.mxu0 0.0
    %269 = vmatpush1.msra.mxu0 0.0
    %270 = vmatprep.subr.mxu0 0.0
    %271 = vmatpush1.msra.mxu0 0.0
    %272 = vmatprep.subr.mxu0 0.0
    %273 = vmatpush1.msra.mxu0 0.0
    %274 = vmatprep.subr.mxu0 0.0
    %275 = vmatpush1.msra.mxu0 0.0
    %276 = vmatprep.subr.mxu0 0.0
    %277 = vmatpush1.msra.mxu0 0.0
    %278 = vmatprep.subr.mxu0 0.0
    %279 = vmatpush1.msra.mxu0 0.0
    %280 = vmatprep.subr.mxu0 0.0
    %281 = vmatpush1.msra.mxu0 0.0
    %282 = vmatprep.subr.mxu0 0.0
    %283 = vmatpush1.msra.mxu0 0.0
    %284 = vmatprep.subr.mxu0 0.0
    %285 = vmatpush1.msra.mxu0 0.0
    %286 = vmatprep.subr.mxu0 0.0
    %287 = vmatpush1.msra.mxu0 0.0
    %288 = vmatprep.subr.mxu0 0.0
    %289 = vmatpush1.msra.mxu0 0.0
    %290 = vmatprep.subr.mxu0 0.0
    %291 = vmatpush1.msra.mxu0 0.0
    %292 = vmatprep.subr.mxu0 0.0
    %293 = vmatpush1.msra.mxu0 0.0
    %294 = vmatprep.mubr.f32.mxu0 0.0
    %295 = vmatmul.mubr.f32.gmra.mrb[0].mxu0 %v88
    %v296 = vpop.f32.mrb[0].mxu0
    %v297 = vadd.f32 0.0, %v296
    %v298 = vpop.f32.mrb[0].mxu0
    %299 = vdwg.mxu0
    %300 = vmatprep.subr.mxu0 0.0
    %301 = vmatpush1.msra.mxu0 %v76
    %302 = vmatprep.subr.mxu0 0.0
    %303 = vmatpush1.msra.mxu0 %v77
    %304 = vmatprep.subr.mxu0 0.0
    %305 = vmatpush1.msra.mxu0 0.0
    %306 = vmatprep.subr.mxu0 0.0
    %307 = vmatpush1.msra.mxu0 0.0
    %308 = vmatprep.subr.mxu0 0.0
    %309 = vmatpush1.msra.mxu0 0.0
    %310 = vmatprep.subr.mxu0 0.0
    %311 = vmatpush1.msra.mxu0 0.0
    %312 = vmatprep.subr.mxu0 0.0
    %313 = vmatpush1.msra.mxu0 0.0
    %314 = vmatprep.subr.mxu0 0.0
    %315 = vmatpush1.msra.mxu0 0.0
    %316 = vmatprep.subr.mxu0 0.0
    %317 = vmatpush1.msra.mxu0 0.0
    %318 = vmatprep.subr.mxu0 0.0
    %319 = vmatpush1.msra.mxu0 0.0
    %320 = vmatprep.subr.mxu0 0.0
    %321 = vmatpush1.msra.mxu0 0.0
    %322 = vmatprep.subr.mxu0 0.0
    %323 = vmatpush1.msra.mxu0 0.0
    %324 = vmatprep.subr.mxu0 0.0
    %325 = vmatpush1.msra.mxu0 0.0
    %326 = vmatprep.subr.mxu0 0.0
    %327 = vmatpush1.msra.mxu0 0.0
    %328 = vmatprep.subr.mxu0 0.0
    %329 = vmatpush1.msra.mxu0 0.0
    %330 = vmatprep.subr.mxu0 0.0
    %331 = vmatpush1.msra.mxu0 0.0
    %332 = vmatprep.subr.mxu0 0.0
    %333 = vmatpush1.msra.mxu0 0.0
    %334 = vmatprep.subr.mxu0 0.0
    %335 = vmatpush1.msra.mxu0 0.0
    %336 = vmatprep.subr.mxu0 0.0
    %337 = vmatpush1.msra.mxu0 0.0
    %338 = vmatprep.subr.mxu0 0.0
    %339 = vmatpush1.msra.mxu0 0.0
    %340 = vmatprep.subr.mxu0 0.0
    %341 = vmatpush1.msra.mxu0 0.0
    %342 = vmatprep.subr.mxu0 0.0
    %343 = vmatpush1.msra.mxu0 0.0
    %344 = vmatprep.subr.mxu0 0.0
    %345 = vmatpush1.msra.mxu0 0.0
    %346 = vmatprep.subr.mxu0 0.0
    %347 = vmatpush1.msra.mxu0 0.0
    %348 = vmatprep.subr.mxu0 0.0
    %349 = vmatpush1.msra.mxu0 0.0
    %350 = vmatprep.subr.mxu0 0.0
    %351 = vmatpush1.msra.mxu0 0.0
    %352 = vmatprep.subr.mxu0 0.0
    %353 = vmatpush1.msra.mxu0 0.0
    %354 = vmatprep.subr.mxu0 0.0
    %355 = vmatpush1.msra.mxu0 0.0
    %356 = vmatprep.subr.mxu0 0.0
    %357 = vmatpush1.msra.mxu0 0.0
    %358 = vmatprep.subr.mxu0 0.0
    %359 = vmatpush1.msra.mxu0 0.0
    %360 = vmatprep.subr.mxu0 0.0
    %361 = vmatpush1.msra.mxu0 0.0
    %362 = vmatprep.subr.mxu0 0.0
    %363 = vmatpush1.msra.mxu0 0.0
    %364 = vmatprep.mubr.f32.mxu0 0.0
    %365 = vmatmul.mubr.f32.gmra.mrb[0].mxu0 %v88
    %v366 = vpop.f32.mrb[0].mxu0
    %v367 = vadd.f32 0.0, %v366
    %v368 = vpop.f32.mrb[0].mxu0
    %369 = vdwg.mxu0
    %370 = vmatprep.subr.mxu0 0.0
    %371 = vmatpush1.msra.mxu0 %v78
    %372 = vmatprep.subr.mxu0 0.0
    %373 = vmatpush1.msra.mxu0 %v79
    %374 = vmatprep.subr.mxu0 0.0
    %375 = vmatpush1.msra.mxu0 0.0
    %376 = vmatprep.subr.mxu0 0.0
    %377 = vmatpush1.msra.mxu0 0.0
    %378 = vmatprep.subr.mxu0 0.0
    %379 = vmatpush1.msra.mxu0 0.0
    %380 = vmatprep.subr.mxu0 0.0
    %381 = vmatpush1.msra.mxu0 0.0
    %382 = vmatprep.subr.mxu0 0.0
    %383 = vmatpush1.msra.mxu0 0.0
    %384 = vmatprep.subr.mxu0 0.0
    %385 = vmatpush1.msra.mxu0 0.0
    %386 = vmatprep.subr.mxu0 0.0
    %387 = vmatpush1.msra.mxu0 0.0
    %388 = vmatprep.subr.mxu0 0.0
    %389 = vmatpush1.msra.mxu0 0.0
    %390 = vmatprep.subr.mxu0 0.0
    %391 = vmatpush1.msra.mxu0 0.0
    %392 = vmatprep.subr.mxu0 0.0
    %393 = vmatpush1.msra.mxu0 0.0
    %394 = vmatprep.subr.mxu0 0.0
    %395 = vmatpush1.msra.mxu0 0.0
    %396 = vmatprep.subr.mxu0 0.0
    %397 = vmatpush1.msra.mxu0 0.0
    %398 = vmatprep.subr.mxu0 0.0
    %399 = vmatpush1.msra.mxu0 0.0
    %400 = vmatprep.subr.mxu0 0.0
    %401 = vmatpush1.msra.mxu0 0.0
    %402 = vmatprep.subr.mxu0 0.0
    %403 = vmatpush1.msra.mxu0 0.0
    %404 = vmatprep.subr.mxu0 0.0
    %405 = vmatpush1.msra.mxu0 0.0
    %406 = vmatprep.subr.mxu0 0.0
    %407 = vmatpush1.msra.mxu0 0.0
    %408 = vmatprep.subr.mxu0 0.0
    %409 = vmatpush1.msra.mxu0 0.0
    %410 = vmatprep.subr.mxu0 0.0
    %411 = vmatpush1.msra.mxu0 0.0
    %412 = vmatprep.subr.mxu0 0.0
    %413 = vmatpush1.msra.mxu0 0.0
    %414 = vmatprep.subr.mxu0 0.0
    %415 = vmatpush1.msra.mxu0 0.0
    %416 = vmatprep.subr.mxu0 0.0
    %417 = vmatpush1.msra.mxu0 0.0
    %418 = vmatprep.subr.mxu0 0.0
    %419 = vmatpush1.msra.mxu0 0.0
    %420 = vmatprep.subr.mxu0 0.0
    %421 = vmatpush1.msra.mxu0 0.0
    %422 = vmatprep.subr.mxu0 0.0
    %423 = vmatpush1.msra.mxu0 0.0
    %424 = vmatprep.subr.mxu0 0.0
    %425 = vmatpush1.msra.mxu0 0.0
    %426 = vmatprep.subr.mxu0 0.0
    %427 = vmatpush1.msra.mxu0 0.0
    %428 = vmatprep.subr.mxu0 0.0
    %429 = vmatpush1.msra.mxu0 0.0
    %430 = vmatprep.subr.mxu0 0.0
    %431 = vmatpush1.msra.mxu0 0.0
    %432 = vmatprep.subr.mxu0 0.0
    %433 = vmatpush1.msra.mxu0 0.0
    %434 = vmatprep.mubr.f32.mxu0 0.0
    %435 = vmatmul.mubr.f32.gmra.mrb[0].mxu0 %v88
    %v436 = vpop.f32.mrb[0].mxu0
    %v437 = vadd.f32 0.0, %v436
    %v438 = vpop.f32.mrb[0].mxu0
    %439 = vdwg.mxu0
    %440 = vmatprep.subr.mxu0 0.0
    %441 = vmatpush1.msra.mxu0 %v80
    %442 = vmatprep.subr.mxu0 0.0
    %443 = vmatpush1.msra.mxu0 %v81
    %444 = vmatprep.subr.mxu0 0.0
    %445 = vmatpush1.msra.mxu0 0.0
    %446 = vmatprep.subr.mxu0 0.0
    %447 = vmatpush1.msra.mxu0 0.0
    %448 = vmatprep.subr.mxu0 0.0
    %449 = vmatpush1.msra.mxu0 0.0
    %450 = vmatprep.subr.mxu0 0.0
    %451 = vmatpush1.msra.mxu0 0.0
    %452 = vmatprep.subr.mxu0 0.0
    %453 = vmatpush1.msra.mxu0 0.0
    %454 = vmatprep.subr.mxu0 0.0
    %455 = vmatpush1.msra.mxu0 0.0
    %456 = vmatprep.subr.mxu0 0.0
    %457 = vmatpush1.msra.mxu0 0.0
    %458 = vmatprep.subr.mxu0 0.0
    %459 = vmatpush1.msra.mxu0 0.0
    %460 = vmatprep.subr.mxu0 0.0
    %461 = vmatpush1.msra.mxu0 0.0
    %462 = vmatprep.subr.mxu0 0.0
    %463 = vmatpush1.msra.mxu0 0.0
    %464 = vmatprep.subr.mxu0 0.0
    %465 = vmatpush1.msra.mxu0 0.0
    %466 = vmatprep.subr.mxu0 0.0
    %467 = vmatpush1.msra.mxu0 0.0
    %468 = vmatprep.subr.mxu0 0.0
    %469 = vmatpush1.msra.mxu0 0.0
    %470 = vmatprep.subr.mxu0 0.0
    %471 = vmatpush1.msra.mxu0 0.0
    %472 = vmatprep.subr.mxu0 0.0
    %473 = vmatpush1.msra.mxu0 0.0
    %474 = vmatprep.subr.mxu0 0.0
    %475 = vmatpush1.msra.mxu0 0.0
    %476 = vmatprep.subr.mxu0 0.0
    %477 = vmatpush1.msra.mxu0 0.0
    %478 = vmatprep.subr.mxu0 0.0
    %479 = vmatpush1.msra.mxu0 0.0
    %480 = vmatprep.subr.mxu0 0.0
    %481 = vmatpush1.msra.mxu0 0.0
    %482 = vmatprep.subr.mxu0 0.0
    %483 = vmatpush1.msra.mxu0 0.0
    %484 = vmatprep.subr.mxu0 0.0
    %485 = vmatpush1.msra.mxu0 0.0
    %486 = vmatprep.subr.mxu0 0.0
    %487 = vmatpush1.msra.mxu0 0.0
    %488 = vmatprep.subr.mxu0 0.0
    %489 = vmatpush1.msra.mxu0 0.0
    %490 = vmatprep.subr.mxu0 0.0
    %491 = vmatpush1.msra.mxu0 0.0
    %492 = vmatprep.subr.mxu0 0.0
    %493 = vmatpush1.msra.mxu0 0.0
    %494 = vmatprep.subr.mxu0 0.0
    %495 = vmatpush1.msra.mxu0 0.0
    %496 = vmatprep.subr.mxu0 0.0
    %497 = vmatpush1.msra.mxu0 0.0
    %498 = vmatprep.subr.mxu0 0.0
    %499 = vmatpush1.msra.mxu0 0.0
    %500 = vmatprep.subr.mxu0 0.0
    %501 = vmatpush1.msra.mxu0 0.0
    %502 = vmatprep.subr.mxu0 0.0
    %503 = vmatpush1.msra.mxu0 0.0
    %504 = vmatprep.mubr.f32.mxu0 0.0
    %505 = vmatmul.mubr.f32.gmra.mrb[0].mxu0 %v88
    %v506 = vpop.f32.mrb[0].mxu0
    %v507 = vadd.f32 0.0, %v506
    %v508 = vpop.f32.mrb[0].mxu0
    %509 = vdwg.mxu0
    %510 = vmatprep.subr.mxu0 0.0
    %511 = vmatpush1.msra.mxu0 %v82
    %512 = vmatprep.subr.mxu0 0.0
    %513 = vmatpush1.msra.mxu0 %v83
    %514 = vmatprep.subr.mxu0 0.0
    %515 = vmatpush1.msra.mxu0 0.0
    %516 = vmatprep.subr.mxu0 0.0
    %517 = vmatpush1.msra.mxu0 0.0
    %518 = vmatprep.subr.mxu0 0.0
    %519 = vmatpush1.msra.mxu0 0.0
    %520 = vmatprep.subr.mxu0 0.0
    %521 = vmatpush1.msra.mxu0 0.0
    %522 = vmatprep.subr.mxu0 0.0
    %523 = vmatpush1.msra.mxu0 0.0
    %524 = vmatprep.subr.mxu0 0.0
    %525 = vmatpush1.msra.mxu0 0.0
    %526 = vmatprep.subr.mxu0 0.0
    %527 = vmatpush1.msra.mxu0 0.0
    %528 = vmatprep.subr.mxu0 0.0
    %529 = vmatpush1.msra.mxu0 0.0
    %530 = vmatprep.subr.mxu0 0.0
    %531 = vmatpush1.msra.mxu0 0.0
    %532 = vmatprep.subr.mxu0 0.0
    %533 = vmatpush1.msra.mxu0 0.0
    %534 = vmatprep.subr.mxu0 0.0
    %535 = vmatpush1.msra.mxu0 0.0
    %536 = vmatprep.subr.mxu0 0.0
    %537 = vmatpush1.msra.mxu0 0.0
    %538 = vmatprep.subr.mxu0 0.0
    %539 = vmatpush1.msra.mxu0 0.0
    %540 = vmatprep.subr.mxu0 0.0
    %541 = vmatpush1.msra.mxu0 0.0
    %542 = vmatprep.subr.mxu0 0.0
    %543 = vmatpush1.msra.mxu0 0.0
    %544 = vmatprep.subr.mxu0 0.0
    %545 = vmatpush1.msra.mxu0 0.0
    %546 = vmatprep.subr.mxu0 0.0
    %547 = vmatpush1.msra.mxu0 0.0
    %548 = vmatprep.subr.mxu0 0.0
    %549 = vmatpush1.msra.mxu0 0.0
    %550 = vmatprep.subr.mxu0 0.0
    %551 = vmatpush1.msra.mxu0 0.0
    %552 = vmatprep.subr.mxu0 0.0
    %553 = vmatpush1.msra.mxu0 0.0
    %554 = vmatprep.subr.mxu0 0.0
    %555 = vmatpush1.msra.mxu0 0.0
    %556 = vmatprep.subr.mxu0 0.0
    %557 = vmatpush1.msra.mxu0 0.0
    %558 = vmatprep.subr.mxu0 0.0
    %559 = vmatpush1.msra.mxu0 0.0
    %560 = vmatprep.subr.mxu0 0.0
    %561 = vmatpush1.msra.mxu0 0.0
    %562 = vmatprep.subr.mxu0 0.0
    %563 = vmatpush1.msra.mxu0 0.0
    %564 = vmatprep.subr.mxu0 0.0
    %565 = vmatpush1.msra.mxu0 0.0
    %566 = vmatprep.subr.mxu0 0.0
    %567 = vmatpush1.msra.mxu0 0.0
    %568 = vmatprep.subr.mxu0 0.0
    %569 = vmatpush1.msra.mxu0 0.0
    %570 = vmatprep.subr.mxu0 0.0
    %571 = vmatpush1.msra.mxu0 0.0
    %572 = vmatprep.subr.mxu0 0.0
    %573 = vmatpush1.msra.mxu0 0.0
    %574 = vmatprep.mubr.f32.mxu0 0.0
    %575 = vmatmul.mubr.f32.gmra.mrb[0].mxu0 %v88
    %v576 = vpop.f32.mrb[0].mxu0
    %v577 = vadd.f32 0.0, %v576
    %v578 = vpop.f32.mrb[0].mxu0
    %579 = vdwg.mxu0
    %580 = vmatprep.subr.mxu0 0.0
    %581 = vmatpush1.msra.mxu0 %v84
    %582 = vmatprep.subr.mxu0 0.0
    %583 = vmatpush1.msra.mxu0 %v85
    %584 = vmatprep.subr.mxu0 0.0
    %585 = vmatpush1.msra.mxu0 0.0
    %586 = vmatprep.subr.mxu0 0.0
    %587 = vmatpush1.msra.mxu0 0.0
    %588 = vmatprep.subr.mxu0 0.0
    %589 = vmatpush1.msra.mxu0 0.0
    %590 = vmatprep.subr.mxu0 0.0
    %591 = vmatpush1.msra.mxu0 0.0
    %592 = vmatprep.subr.mxu0 0.0
    %593 = vmatpush1.msra.mxu0 0.0
    %594 = vmatprep.subr.mxu0 0.0
    %595 = vmatpush1.msra.mxu0 0.0
    %596 = vmatprep.subr.mxu0 0.0
    %597 = vmatpush1.msra.mxu0 0.0
    %598 = vmatprep.subr.mxu0 0.0
    %599 = vmatpush1.msra.mxu0 0.0
    %600 = vmatprep.subr.mxu0 0.0
    %601 = vmatpush1.msra.mxu0 0.0
    %602 = vmatprep.subr.mxu0 0.0
    %603 = vmatpush1.msra.mxu0 0.0
    %604 = vmatprep.subr.mxu0 0.0
    %605 = vmatpush1.msra.mxu0 0.0
    %606 = vmatprep.subr.mxu0 0.0
    %607 = vmatpush1.msra.mxu0 0.0
    %608 = vmatprep.subr.mxu0 0.0
    %609 = vmatpush1.msra.mxu0 0.0
    %610 = vmatprep.subr.mxu0 0.0
    %611 = vmatpush1.msra.mxu0 0.0
    %612 = vmatprep.subr.mxu0 0.0
    %613 = vmatpush1.msra.mxu0 0.0
    %614 = vmatprep.subr.mxu0 0.0
    %615 = vmatpush1.msra.mxu0 0.0
    %616 = vmatprep.subr.mxu0 0.0
    %617 = vmatpush1.msra.mxu0 0.0
    %618 = vmatprep.subr.mxu0 0.0
    %619 = vmatpush1.msra.mxu0 0.0
    %620 = vmatprep.subr.mxu0 0.0
    %621 = vmatpush1.msra.mxu0 0.0
    %622 = vmatprep.subr.mxu0 0.0
    %623 = vmatpush1.msra.mxu0 0.0
    %624 = vmatprep.subr.mxu0 0.0
    %625 = vmatpush1.msra.mxu0 0.0
    %626 = vmatprep.subr.mxu0 0.0
    %627 = vmatpush1.msra.mxu0 0.0
    %628 = vmatprep.subr.mxu0 0.0
    %629 = vmatpush1.msra.mxu0 0.0
    %630 = vmatprep.subr.mxu0 0.0
    %631 = vmatpush1.msra.mxu0 0.0
    %632 = vmatprep.subr.mxu0 0.0
    %633 = vmatpush1.msra.mxu0 0.0
    %634 = vmatprep.subr.mxu0 0.0
    %635 = vmatpush1.msra.mxu0 0.0
    %636 = vmatprep.subr.mxu0 0.0
    %637 = vmatpush1.msra.mxu0 0.0
    %638 = vmatprep.subr.mxu0 0.0
    %639 = vmatpush1.msra.mxu0 0.0
    %640 = vmatprep.subr.mxu0 0.0
    %641 = vmatpush1.msra.mxu0 0.0
    %642 = vmatprep.subr.mxu0 0.0
    %643 = vmatpush1.msra.mxu0 0.0
    %644 = vmatprep.mubr.f32.mxu0 0.0
    %645 = vmatmul.mubr.f32.gmra.mrb[0].mxu0 %v88
    %v646 = vpop.f32.mrb[0].mxu0
    %v647 = vadd.f32 0.0, %v646
    %v648 = vpop.f32.mrb[0].mxu0
    %649 = vdwg.mxu0
    %v650 = vld [vmem:[#allocation5] sm:$0xff]
    %v651 = vld [vmem:[#allocation5 + $0x8] sm:$0xff]
    %v652 = vld [vmem:[#allocation5 + $0x10] sm:$0xff]
    %v653 = vld [vmem:[#allocation5 + $0x18] sm:$0xff]
    %v654 = vld [vmem:[#allocation7] sm:$0xff]
    %vm655 = vcmask 261120
    %v657 = vsel %vm655, %v157, 0
    %v660 = vsel %vm655, %v227, 0
    %v663 = vsel %vm655, %v297, 0
    %v666 = vsel %vm655, %v367, 0
    %v669 = vsel %vm655, %v437, 0
    %v672 = vsel %vm655, %v507, 0
    %v675 = vsel %vm655, %v577, 0
    %v678 = vsel %vm655, %v647, 0
    %680 = vmatprep.subr.mxu0 0.0
    %681 = vmatpush1.msra.mxu0 %v650
    %682 = vmatprep.subr.mxu0 0.0
    %683 = vmatpush1.msra.mxu0 %v651
    %684 = vmatprep.subr.mxu0 0.0
    %685 = vmatpush1.msra.mxu0 %v652
    %686 = vmatprep.subr.mxu0 0.0
    %687 = vmatpush1.msra.mxu0 %v653
    %688 = vmatprep.subr.mxu0 0.0
    %689 = vmatpush1.msra.mxu0 0.0
    %690 = vmatprep.subr.mxu0 0.0
    %691 = vmatpush1.msra.mxu0 0.0
    %692 = vmatprep.subr.mxu0 0.0
    %693 = vmatpush1.msra.mxu0 0.0
    %694 = vmatprep.subr.mxu0 0.0
    %695 = vmatpush1.msra.mxu0 0.0
    %696 = vmatprep.subr.mxu0 0.0
    %697 = vmatpush1.msra.mxu0 0.0
    %698 = vmatprep.subr.mxu0 0.0
    %699 = vmatpush1.msra.mxu0 0.0
    %700 = vmatprep.subr.mxu0 0.0
    %701 = vmatpush1.msra.mxu0 0.0
    %702 = vmatprep.subr.mxu0 0.0
    %703 = vmatpush1.msra.mxu0 0.0
    %704 = vmatprep.subr.mxu0 0.0
    %705 = vmatpush1.msra.mxu0 0.0
    %706 = vmatprep.subr.mxu0 0.0
    %707 = vmatpush1.msra.mxu0 0.0
    %708 = vmatprep.subr.mxu0 0.0
    %709 = vmatpush1.msra.mxu0 0.0
    %710 = vmatprep.subr.mxu0 0.0
    %711 = vmatpush1.msra.mxu0 0.0
    %712 = vmatprep.subr.mxu0 0.0
    %713 = vmatpush1.msra.mxu0 0.0
    %714 = vmatprep.subr.mxu0 0.0
    %715 = vmatpush1.msra.mxu0 0.0
    %716 = vmatprep.subr.mxu0 0.0
    %717 = vmatpush1.msra.mxu0 0.0
    %718 = vmatprep.subr.mxu0 0.0
    %719 = vmatpush1.msra.mxu0 0.0
    %720 = vmatprep.subr.mxu0 0.0
    %721 = vmatpush1.msra.mxu0 0.0
    %722 = vmatprep.subr.mxu0 0.0
    %723 = vmatpush1.msra.mxu0 0.0
    %724 = vmatprep.subr.mxu0 0.0
    %725 = vmatpush1.msra.mxu0 0.0
    %726 = vmatprep.subr.mxu0 0.0
    %727 = vmatpush1.msra.mxu0 0.0
    %728 = vmatprep.subr.mxu0 0.0
    %729 = vmatpush1.msra.mxu0 0.0
    %730 = vmatprep.subr.mxu0 0.0
    %731 = vmatpush1.msra.mxu0 0.0
    %732 = vmatprep.subr.mxu0 0.0
    %733 = vmatpush1.msra.mxu0 0.0
    %734 = vmatprep.subr.mxu0 0.0
    %735 = vmatpush1.msra.mxu0 0.0
    %736 = vmatprep.subr.mxu0 0.0
    %737 = vmatpush1.msra.mxu0 0.0
    %738 = vmatprep.subr.mxu0 0.0
    %739 = vmatpush1.msra.mxu0 0.0
    %740 = vmatprep.subr.mxu0 0.0
    %741 = vmatpush1.msra.mxu0 0.0
    %742 = vmatprep.subr.mxu0 0.0
    %743 = vmatpush1.msra.mxu0 0.0
    %744 = vmatprep.mubr.f32.mxu0 0.0
    %745 = vmatmul.mubr.f32.gmra.mrb[0].mxu0 %v657
    %v746 = vpop.f32.mrb[0].mxu0
    %v747 = vadd.f32 %v654, %v746
    %v748 = vpop.f32.mrb[0].mxu0
    %749 = vmatprep.mubr.f32.mxu0 0.0
    %750 = vmatmul.mubr.f32.gmra.mrb[0].mxu0 %v660
    %v751 = vpop.f32.mrb[0].mxu0
    %v752 = vadd.f32 %v654, %v751
    %v753 = vpop.f32.mrb[0].mxu0
    %754 = vmatprep.mubr.f32.mxu0 0.0
    %755 = vmatmul.mubr.f32.gmra.mrb[0].mxu0 %v663
    %v756 = vpop.f32.mrb[0].mxu0
    %v757 = vadd.f32 %v654, %v756
    %v758 = vpop.f32.mrb[0].mxu0
    %759 = vmatprep.mubr.f32.mxu0 0.0
    %760 = vmatmul.mubr.f32.gmra.mrb[0].mxu0 %v666
    %v761 = vpop.f32.mrb[0].mxu0
    %v762 = vadd.f32 %v654, %v761
    %v763 = vpop.f32.mrb[0].mxu0
    %764 = vmatprep.mubr.f32.mxu0 0.0
    %765 = vmatmul.mubr.f32.gmra.mrb[0].mxu0 %v669
    %v766 = vpop.f32.mrb[0].mxu0
    %v767 = vadd.f32 %v654, %v766
    %v768 = vpop.f32.mrb[0].mxu0
    %769 = vmatprep.mubr.f32.mxu0 0.0
    %770 = vmatmul.mubr.f32.gmra.mrb[0].mxu0 %v672
    %v771 = vpop.f32.mrb[0].mxu0
    %v772 = vadd.f32 %v654, %v771
    %v773 = vpop.f32.mrb[0].mxu0
    %774 = vmatprep.mubr.f32.mxu0 0.0
    %775 = vmatmul.mubr.f32.gmra.mrb[0].mxu0 %v675
    %v776 = vpop.f32.mrb[0].mxu0
    %v777 = vadd.f32 %v654, %v776
    %v778 = vpop.f32.mrb[0].mxu0
    %779 = vmatprep.mubr.f32.mxu0 0.0
    %780 = vmatmul.mubr.f32.gmra.mrb[0].mxu0 %v678
    %v781 = vpop.f32.mrb[0].mxu0
    %v782 = vadd.f32 %v654, %v781
    %v783 = vpop.f32.mrb[0].mxu0
    %784 = vdwg.mxu0
    %785 = vst [vmem:[#allocation10] sm:$0xff] %v747
    %786 = vst [vmem:[#allocation10 + $0x8] sm:$0xff] %v752
    %787 = vst [vmem:[#allocation10 + $0x10] sm:$0xff] %v757
    %788 = vst [vmem:[#allocation10 + $0x18] sm:$0xff] %v762
    %789 = vst [vmem:[#allocation10 + $0x20] sm:$0xff] %v767
    %790 = vst [vmem:[#allocation10 + $0x28] sm:$0xff] %v772
    %791 = vst [vmem:[#allocation10 + $0x30] sm:$0xff] %v777
    %792 = vst [vmem:[#allocation10 + $0x38] sm:$0xff] %v782
    // Predicated region
    $region34: #{tpu_custom_call.1} parent=1 // pred_check
      _
    $region35: #{tpu_custom_call.1} parent=1 // pred_check_branch
      %794 = sbr.rel (0) target = $region37
    $region36: #{tpu_custom_call.1} parent=1 // pred_region
      %s796 = ssub.s32 1024, 1024
      %797 = vsyncadd [#allocation4], %s796
      %s798 = sshll.u32 [#allocation10], 4
      %s799 = int_to_ptr.vmem [resolvable:$true] %s798
      %804 = dma.vmem_to_hbm [thread:$0]  %s799, 1024, %s4, [#allocation4], 128, 128, 8
    $region37: #{tpu_custom_call.1} parent=1 // pred_fallthru
      _
    // Predicated region
    $region38: #{tpu_custom_call.1} parent=1 // pred_check
      _
    $region39: #{tpu_custom_call.1} parent=1 // pred_check_branch
      %806 = sbr.rel (0) target = $region41
    $region40: #{tpu_custom_call.1} parent=1 // pred_region
      %807 = dma.done [#allocation4], 1024
    $region41: #{tpu_custom_call.1} parent=1 // pred_fallthru
      _
    %808 = vsyncpa [#allocation3], 1
    %809 = vsyncpa [#allocation6], 1
    %810 = vsyncpa [#allocation9], 1
    %811 = vsyncpa [#allocation4], 1

</llo_original>
